<compile_context>
chip_gen: v5e
topology: v5e:2x2
jax: 0.10.0
libtpu: 0.0.40
codegen_flags: <defaults>
</compile_context>

<pallas_src>
import functools

import jax
import jax.numpy as jnp
from jax import lax
from jax.experimental import pallas as pl
from jax.experimental.pallas import tpu as pltpu


def _round_up(x, m):
    return ((x + m - 1) // m) * m


def swem_kernel(ids_ref, tab_ref, w1_ref, b1_ref, w2_ref, b2_ref, out_ref,
                acc_ref, *, inv_seq_len):
    # ids_ref: (tS, tB) int32       tab_ref: (Vp, Ep)
    # w1_ref:  (Ep, Hp)  b1_ref: (1, Hp)
    # w2_ref:  (Hp, Op)  b2_ref: (1, Op)
    # out_ref: (tB, Op)             acc_ref: (tB, Ep) f32 scratch accumulator
    s_step = pl.program_id(1)

    @pl.when(s_step == 0)
    def _():
        acc_ref[...] = jnp.zeros_like(acc_ref)

    ids = ids_ref[...]                                   # (tS, tB)
    t_s, t_b = ids.shape
    v_pad = tab_ref.shape[0]

    # One-hot counts for this seq tile: counts[b, v] = #occurrences of token v.
    vocab_iota = lax.broadcasted_iota(jnp.int32, (t_s, t_b, v_pad), 2)
    onehot = (ids[:, :, None] == vocab_iota).astype(jnp.float32)
    counts = jnp.sum(onehot, axis=0)                     # (tB, Vp)

    # Partial embedding sums for this tile via the MXU: counts @ table.
    acc_ref[...] += jnp.dot(counts, tab_ref[...],
                            preferred_element_type=jnp.float32)

    @pl.when(s_step == pl.num_programs(1) - 1)
    def _():
        pooled = acc_ref[...] * inv_seq_len              # mean over true seq len
        h = jnp.dot(pooled, w1_ref[...],
                    preferred_element_type=jnp.float32) + b1_ref[...]
        h = jnp.maximum(h, 0.0)                          # ReLU
        out = jnp.dot(h, w2_ref[...],
                      preferred_element_type=jnp.float32) + b2_ref[...]
        out_ref[...] = out.astype(out_ref.dtype)


def swem_forward(token_ids, embedding_table, w1, b1, w2, b2, *, seq_tile=None):
    """token_ids: (S, B) int32.  w1:(E,H) b1:(1,H) w2:(H,O) b2:(1,O).

    Returns (B, num_outputs) float32.  Weights are stored (in, out) so the
    kernel computes y = x @ W + b.
    """
    S, B = token_ids.shape
    V, E = embedding_table.shape
    H = w1.shape[1]
    O = w2.shape[1]

    # Lane / sublane friendly padded sizes.
    B_pad = _round_up(max(B, 8), 8)
    V_pad = _round_up(V, 128)
    E_pad = _round_up(E, 128)
    H_pad = _round_up(H, 128)
    O_pad = _round_up(O, 128)

    # Seq tile must be a multiple of 8 (sublane constraint on the (tS,tB) block).
    if seq_tile is None:
        seq_tile = min(_round_up(S, 8), 256)
    t_s = _round_up(seq_tile, 8)
    S_pad = _round_up(S, t_s)
    if S_pad != S and V_pad == V:
        # Ensure at least one all-zero table row so padded tokens contribute 0.
        V_pad += 128

    t_b = B_pad  # single batch tile at these sizes; the axis stays "parallel".

    # Pad token ids.  Padded seq rows point at the (zero) padded table rows,
    # so they add nothing to the embedding sum; mean still divides by true S.
    ids = jnp.zeros((S_pad, B_pad), jnp.int32)
    ids = ids.at[:S, :B].set(token_ids.astype(jnp.int32))
    if S_pad != S:
        ids = ids.at[S:, :].set(V)

    # Zero-pad table / weights / biases to lane-dense shapes.
    tab = jnp.zeros((V_pad, E_pad), jnp.float32).at[:V, :E].set(embedding_table)
    w1p = jnp.zeros((E_pad, H_pad), jnp.float32).at[:E, :H].set(w1)
    b1p = jnp.zeros((1, H_pad), jnp.float32).at[:, :H].set(b1.reshape(1, H))
    w2p = jnp.zeros((H_pad, O_pad), jnp.float32).at[:H, :O].set(w2)
    b2p = jnp.zeros((1, O_pad), jnp.float32).at[:, :O].set(b2.reshape(1, O))

    grid = (B_pad // t_b, S_pad // t_s)

    out_padded = pl.pallas_call(
        functools.partial(swem_kernel, inv_seq_len=1.0 / S),
        out_shape=jax.ShapeDtypeStruct((B_pad, O_pad), jnp.float32),
        grid_spec=pltpu.PrefetchScalarGridSpec(
            num_scalar_prefetch=0,
            grid=grid,
            in_specs=[
                # Streaming token-id tiles over the seq reduction axis.
                pl.BlockSpec((t_s, t_b), lambda b, s: (s, b)),
                # Table + weights + biases: grid-invariant, VMEM-resident.
                pl.BlockSpec((V_pad, E_pad), lambda b, s: (0, 0)),
                pl.BlockSpec((E_pad, H_pad), lambda b, s: (0, 0)),
                pl.BlockSpec((1, H_pad), lambda b, s: (0, 0)),
                pl.BlockSpec((H_pad, O_pad), lambda b, s: (0, 0)),
                pl.BlockSpec((1, O_pad), lambda b, s: (0, 0)),
            ],
            out_specs=pl.BlockSpec((t_b, O_pad), lambda b, s: (b, 0)),
            scratch_shapes=[pltpu.VMEM((t_b, E_pad), jnp.float32)],
        ),
        compiler_params=pltpu.CompilerParams(
            dimension_semantics=("parallel", "arbitrary"),
            vmem_limit_bytes=48 * 1024 * 1024,  # valid on v5e/v6e/v7x
        ),
    )(ids, tab, w1p, b1p, w2p, b2p)

    # TODO(synk): for large vocab/embedding, switch table + weights to bf16
    # (f32 accumulation already in place) to halve HBM traffic.
    return out_padded[:B, :O]


def init_params(key, vocab_size, embedding_size, hidden_dim, num_outputs):
    """Deterministic parameter init matching the module's shapes.

    PyTorch shapes: embedding (V, E); fc1.weight (H, E), fc1.bias (H,);
    fc2.weight (O, H), fc2.bias (O,).  Linear weights are stored transposed
    (in, out) so the kernel computes x @ W + b.
    """
    k_emb, k_w1, k_b1, k_w2, k_b2 = jax.random.split(key, 5)
    emb_table = jax.random.normal(k_emb, (vocab_size, embedding_size), jnp.float32)

    bound1 = 1.0 / jnp.sqrt(embedding_size)
    w1 = jax.random.uniform(k_w1, (embedding_size, hidden_dim), jnp.float32,
                            -bound1, bound1)
    b1 = jax.random.uniform(k_b1, (1, hidden_dim), jnp.float32, -bound1, bound1)

    bound2 = 1.0 / jnp.sqrt(hidden_dim)
    w2 = jax.random.uniform(k_w2, (hidden_dim, num_outputs), jnp.float32,
                            -bound2, bound2)
    b2 = jax.random.uniform(k_b2, (1, num_outputs), jnp.float32, -bound2, bound2)
    return emb_table, w1, b1, w2, b2


if __name__ == "__main__":
    vocab_size = 50
    embedding_size = 32
    hidden_dim = 32
    num_outputs = 4
    seq_len = 16
    batch = 4

    key = jax.random.PRNGKey(0)
    k_params, k_tok = jax.random.split(key)
    emb_table, w1, b1, w2, b2 = init_params(
        k_params, vocab_size, embedding_size, hidden_dim, num_outputs)

    token_ids = jax.random.randint(k_tok, (seq_len, batch), 0, vocab_size,
                                   dtype=jnp.int32)

    # seq_tile=8 -> 2 reduction steps over the seq axis (exercises the
    # accumulator / pl.when init+finalize path).
    out = swem_forward(token_ids, emb_table, w1, b1, w2, b2, seq_tile=8)
    out = jax.block_until_ready(out)

    # Pure-JAX reference of the same forward pass (full f32 precision).
    emb = jnp.take(emb_table, token_ids, axis=0)           # (S, B, E)
    pooled = jnp.mean(emb, axis=0)                         # (B, E)
    hidden = jnp.maximum(
        jnp.dot(pooled, w1, precision=lax.Precision.HIGHEST) + b1, 0.0)
    ref = jnp.dot(hidden, w2, precision=lax.Precision.HIGHEST) + b2

    assert out.shape == (batch, num_outputs)
    assert jnp.allclose(out, ref, atol=1e-4, rtol=1e-4), (
        float(jnp.max(jnp.abs(out - ref))))

    print("KERNEL_OK")
</pallas_src>

<mosaic_0001>
module attributes {stable_mosaic.version = 11 : i64} {
  func.func @swem_kernel(%arg0: i32, %arg1: i32, %arg2: memref<8x8xi32, #tpu.memory_space<vmem>>, %arg3: memref<128x128xf32, #tpu.memory_space<vmem>>, %arg4: memref<128x128xf32, #tpu.memory_space<vmem>>, %arg5: memref<1x128xf32, #tpu.memory_space<vmem>>, %arg6: memref<128x128xf32, #tpu.memory_space<vmem>>, %arg7: memref<1x128xf32, #tpu.memory_space<vmem>>, %arg8: memref<8x128xf32, #tpu.memory_space<vmem>>, %arg9: memref<8x128xf32, #tpu.memory_space<vmem>>) attributes {dimension_semantics = [#tpu.dimension_semantics<parallel>, #tpu.dimension_semantics<arbitrary>], iteration_bounds = array<i64: 1, 2>, scalar_prefetch = 0 : i64, scratch_operands = 1 : i64, tpu.core_type = #tpu.core_type<tc>, window_params = [{transform_indices = @transform_0, window_bounds = array<i64: 8, 8>}, {pipeline_mode = #tpu.pipeline_mode<synchronous>, transform_indices = @transform_1, window_bounds = array<i64: 128, 128>}, {pipeline_mode = #tpu.pipeline_mode<synchronous>, transform_indices = @transform_2, window_bounds = array<i64: 128, 128>}, {pipeline_mode = #tpu.pipeline_mode<synchronous>, transform_indices = @transform_3, window_bounds = array<i64: 1, 128>}, {pipeline_mode = #tpu.pipeline_mode<synchronous>, transform_indices = @transform_4, window_bounds = array<i64: 128, 128>}, {pipeline_mode = #tpu.pipeline_mode<synchronous>, transform_indices = @transform_5, window_bounds = array<i64: 1, 128>}, {transform_indices = @transform_6, window_bounds = array<i64: 8, 128>}]} {
    %c0_i32 = arith.constant 0 : i32
    %0 = arith.cmpi eq, %arg1, %c0_i32 : i32
    %1 = arith.extui %0 : i1 to i32
    %c0_i32_0 = arith.constant 0 : i32
    %2 = arith.cmpi ne, %1, %c0_i32_0 : i32
    scf.if %2 {
      %cst_10 = arith.constant 0.000000e+00 : f32
      %19 = vector.broadcast %cst_10 : f32 to vector<8x128xf32>
      %c0_11 = arith.constant 0 : index
      %c0_12 = arith.constant 0 : index
      %20 = vector.load %arg9[%c0_11, %c0_12] : memref<8x128xf32, #tpu.memory_space<vmem>>, vector<8x128xf32>
      tpu.vector_store %arg9[%c0_11, %c0_12], %19 {strides = array<i32>} : memref<8x128xf32, #tpu.memory_space<vmem>>, vector<8x128xf32>,
    } else {
    }
    %c0 = arith.constant 0 : index
    %c0_1 = arith.constant 0 : index
    %3 = vector.load %arg2[%c0, %c0_1] : memref<8x8xi32, #tpu.memory_space<vmem>>, vector<8x8xi32>
    %4 = tpu.iota {dimensions = array<i32: 2>} : vector<8x8x128xi32>
    %5 = vector.shape_cast %3 : vector<8x8xi32> to vector<8x8x1xi32>
    %6 = vector.broadcast %5 : vector<8x8x1xi32> to vector<8x8x128xi32>
    %7 = arith.cmpi eq, %6, %4 : vector<8x8x128xi32>
    %8 = arith.extui %7 : vector<8x8x128xi1> to vector<8x8x128xi32>
    %9 = arith.sitofp %8 : vector<8x8x128xi32> to vector<8x8x128xf32>
    %cst = arith.constant dense<0.000000e+00> : vector<8x128xf32>
    %10 = vector.multi_reduction <add>, %9, %cst [0] : vector<8x8x128xf32> to vector<8x128xf32>
    %c0_2 = arith.constant 0 : index
    %c0_3 = arith.constant 0 : index
    %11 = vector.load %arg9[%c0_2, %c0_3] : memref<8x128xf32, #tpu.memory_space<vmem>>, vector<8x128xf32>
    %c0_4 = arith.constant 0 : index
    %c0_5 = arith.constant 0 : index
    %12 = vector.load %arg3[%c0_4, %c0_5] : memref<128x128xf32, #tpu.memory_space<vmem>>, vector<128x128xf32>
    %cst_6 = arith.constant dense<0.000000e+00> : vector<8x128xf32>
    %13 = tpu.matmul %10, %12, %cst_6 {dimension_numbers = #tpu.dot_dimension_numbers<[1], [0], [0], [1], [0, 0, 1, 1], [], []>} : vector<8x128xf32>, vector<128x128xf32>, vector<8x128xf32> -> vector<8x128xf32>
    %14 = arith.addf %11, %13 : vector<8x128xf32>
    %c0_7 = arith.constant 0 : index
    %c0_8 = arith.constant 0 : index
    %15 = vector.load %arg9[%c0_7, %c0_8] : memref<8x128xf32, #tpu.memory_space<vmem>>, vector<8x128xf32>
    tpu.vector_store %arg9[%c0_7, %c0_8], %14 {strides = array<i32>} : memref<8x128xf32, #tpu.memory_space<vmem>>, vector<8x128xf32>,
    %c1_i32 = arith.constant 1 : i32
    %16 = arith.cmpi eq, %arg1, %c1_i32 : i32
    %17 = arith.extui %16 : i1 to i32
    %c0_i32_9 = arith.constant 0 : i32
    %18 = arith.cmpi ne, %17, %c0_i32_9 : i32
    scf.if %18 {
      %c0_10 = arith.constant 0 : index
      %c0_11 = arith.constant 0 : index
      %19 = vector.load %arg9[%c0_10, %c0_11] : memref<8x128xf32, #tpu.memory_space<vmem>>, vector<8x128xf32>
      %cst_12 = arith.constant 6.250000e-02 : f32
      %20 = vector.broadcast %cst_12 : f32 to vector<8x128xf32>
      %21 = arith.mulf %19, %20 : vector<8x128xf32>
      %c0_13 = arith.constant 0 : index
      %c0_14 = arith.constant 0 : index
      %22 = vector.load %arg4[%c0_13, %c0_14] : memref<128x128xf32, #tpu.memory_space<vmem>>, vector<128x128xf32>
      %cst_15 = arith.constant dense<0.000000e+00> : vector<8x128xf32>
      %23 = tpu.matmul %21, %22, %cst_15 {dimension_numbers = #tpu.dot_dimension_numbers<[1], [0], [0], [1], [0, 0, 1, 1], [], []>} : vector<8x128xf32>, vector<128x128xf32>, vector<8x128xf32> -> vector<8x128xf32>
      %c0_16 = arith.constant 0 : index
      %c0_17 = arith.constant 0 : index
      %24 = vector.load %arg5[%c0_16, %c0_17] : memref<1x128xf32, #tpu.memory_space<vmem>>, vector<1x128xf32>
      %25 = vector.broadcast %24 : vector<1x128xf32> to vector<8x128xf32>
      %26 = arith.addf %23, %25 : vector<8x128xf32>
      %cst_18 = arith.constant 0.000000e+00 : f32
      %27 = vector.broadcast %cst_18 : f32 to vector<8x128xf32>
      %28 = arith.maximumf %26, %27 : vector<8x128xf32>
      %c0_19 = arith.constant 0 : index
      %c0_20 = arith.constant 0 : index
      %29 = vector.load %arg6[%c0_19, %c0_20] : memref<128x128xf32, #tpu.memory_space<vmem>>, vector<128x128xf32>
      %cst_21 = arith.constant dense<0.000000e+00> : vector<8x128xf32>
      %30 = tpu.matmul %28, %29, %cst_21 {dimension_numbers = #tpu.dot_dimension_numbers<[1], [0], [0], [1], [0, 0, 1, 1], [], []>} : vector<8x128xf32>, vector<128x128xf32>, vector<8x128xf32> -> vector<8x128xf32>
      %c0_22 = arith.constant 0 : index
      %c0_23 = arith.constant 0 : index
      %31 = vector.load %arg7[%c0_22, %c0_23] : memref<1x128xf32, #tpu.memory_space<vmem>>, vector<1x128xf32>
      %32 = vector.broadcast %31 : vector<1x128xf32> to vector<8x128xf32>
      %33 = arith.addf %30, %32 : vector<8x128xf32>
      %c0_24 = arith.constant 0 : index
      %c0_25 = arith.constant 0 : index
      %34 = vector.load %arg8[%c0_24, %c0_25] : memref<8x128xf32, #tpu.memory_space<vmem>>, vector<8x128xf32>
      tpu.vector_store %arg8[%c0_24, %c0_25], %33 {strides = array<i32>} : memref<8x128xf32, #tpu.memory_space<vmem>>, vector<8x128xf32>,
    } else {
    }
    return
  }
  func.func @transform_0(%arg0: i32, %arg1: i32) -> (i32, i32) {
    %c0_i32 = arith.constant 0 : i32
    return %arg1, %arg0 : i32, i32
  }
  func.func @transform_1(%arg0: i32, %arg1: i32) -> (i32, i32) {
    %c0_i32 = arith.constant 0 : i32
    %c0_i32_0 = arith.constant 0 : i32
    %c0_i32_1 = arith.constant 0 : i32
    return %c0_i32, %c0_i32_0 : i32, i32
  }
  func.func @transform_2(%arg0: i32, %arg1: i32) -> (i32, i32) {
    %c0_i32 = arith.constant 0 : i32
    %c0_i32_0 = arith.constant 0 : i32
    %c0_i32_1 = arith.constant 0 : i32
    return %c0_i32, %c0_i32_0 : i32, i32
  }
  func.func @transform_3(%arg0: i32, %arg1: i32) -> (i32, i32) {
    %c0_i32 = arith.constant 0 : i32
    %c0_i32_0 = arith.constant 0 : i32
    %c0_i32_1 = arith.constant 0 : i32
    return %c0_i32, %c0_i32_0 : i32, i32
  }
  func.func @transform_4(%arg0: i32, %arg1: i32) -> (i32, i32) {
    %c0_i32 = arith.constant 0 : i32
    %c0_i32_0 = arith.constant 0 : i32
    %c0_i32_1 = arith.constant 0 : i32
    return %c0_i32, %c0_i32_0 : i32, i32
  }
  func.func @transform_5(%arg0: i32, %arg1: i32) -> (i32, i32) {
    %c0_i32 = arith.constant 0 : i32
    %c0_i32_0 = arith.constant 0 : i32
    %c0_i32_1 = arith.constant 0 : i32
    return %c0_i32, %c0_i32_0 : i32, i32
  }
  func.func @transform_6(%arg0: i32, %arg1: i32) -> (i32, i32) {
    %c0_i32 = arith.constant 0 : i32
    %c0_i32_0 = arith.constant 0 : i32
    return %arg0, %c0_i32 : i32, i32
  }
}

</mosaic_0001>

<llo_original>
// kernel: tpu_custom_call.1
$region0: #{tpu_custom_call.1}
  #allocation0 [shape = 'u32[]', space=smem, size = 0x4, offset = 0x4, fixed_abs, tag = 'smem constant byte address 0x4 - core index']
  #allocation1 [shape = 'u32[72,128]{1,0:T(1,128)}', space=vmem, size = 0x9000, scoped, tag = 'internal scratch']
  #allocation2 [shape = 'f32[8,128]{1,0:T(8,128)}', space=vmem, size = 0x1000, scoped, tag = 'scratch operand']
  %s0 = inlined_call_operand.vmem [shape: s32[16,8], index: 0, kind: input, shape index: {}]
  %s1 = inlined_call_operand.hbm [shape: f32[128,128], index: 1, kind: input, shape index: {}]
  %s2 = inlined_call_operand.hbm [shape: f32[128,128], index: 2, kind: input, shape index: {}]
  %s3 = inlined_call_operand.vmem [shape: f32[1,128], index: 3, kind: input, shape index: {}]
  %s4 = inlined_call_operand.hbm [shape: f32[128,128], index: 4, kind: input, shape index: {}]
  %s5 = inlined_call_operand.vmem [shape: f32[1,128], index: 5, kind: input, shape index: {}]
  %s6 = inlined_call_operand.hbm [shape: f32[8,128], index: 6, kind: output, shape index: {}]
  %s7 = sld [smem:[#allocation0]]
  $region77: #{tpu_custom_call.1} parent=0
    _
  %s9 = ssub.s32 1, %s7
  %s10 = scalar_select 0, %s9, %s7
  $region1: #{tpu_custom_call.1} parent=0
    #allocation3 [shape = 'u8[65536]{0}', space=vmem, size = 0x10000, scoped, tag = 'input window, operand 1, single buffered']
    #allocation4 [shape = 's32[2]{0}', space=sflag, size = 0x8, scoped, tag = 'scoped memory for tpu_custom_call.1']
    #allocation5 [shape = 's32[2]{0}', space=sflag, size = 0x8, scoped, tag = 'scoped memory for tpu_custom_call.1']
    #allocation6 [shape = 'u8[65536]{0}', space=vmem, size = 0x10000, scoped, tag = 'input window, operand 2, single buffered']
    #allocation7 [shape = 's32[1]{0}', space=sflag, size = 0x4, scoped, tag = 'scoped memory for tpu_custom_call.1']
    #allocation8 [shape = 'u8[65536]{0}', space=vmem, size = 0x10000, scoped, tag = 'input window, operand 4, single buffered']
    #allocation9 [shape = 'u8[4096]{0}', space=vmem, size = 0x1000, scoped, tag = 'output window, operand 0, single buffered']
    %11 = vsyncpa [#allocation4], 0
    %12 = vsyncpa [#allocation7], 0
    %13 = vsyncpa [#allocation5], 0
    loop: start=0, step=1, limit=4
    $region2: #{tpu_custom_call.1} parent=1 // loop_pre_header
      _
    $region3: #{tpu_custom_call.1} parent=1 // loop_header
      %s15 = sphi 0, %s19
      %p16 = scmp.ge.s32.totalorder %s15, 4
      %s22 = sphi 0, %s34
      %s23 = sphi 0, %s30
      %s24 = sphi 0, %s22
      %s25 = sphi 0, %s23
      %s26 = sphi 0, %s24
      %s27 = sphi 0, %s25
      %s39 = sphi 0, %s41
      %s42 = sphi 0, %s39
      %s43 = sphi 0, %s42
      %s59 = sphi 0, %s43
      %s63 = sphi 0, %s63
      %s65 = sphi 0, %s63
      %s66 = sphi 0, %s65
      %s80 = sphi 0, %s66
      %s84 = sphi 0, %s84
      %s86 = sphi 0, %s84
      %s87 = sphi 0, %s86
      %s101 = sphi 0, %s87
      %s105 = sphi 0, %s105
      %s107 = sphi 0, %s105
      %s108 = sphi 0, %s107
      %s122 = sphi 0, %s108
      %s126 = sphi 0, %s126
      %s128 = sphi 0, %s126
      %s129 = sphi 0, %s128
      %s143 = sphi 0, %s129
      %s147 = sphi 0, %s147
      %s149 = sphi 0, %s147
      %s150 = sphi 0, %s149
      %s164 = sphi 0, %s150
      %s170 = sphi 0, %s172
      %s173 = sphi 0, %s170
      %s174 = sphi 0, %s173
      %s190 = sphi 0, %s174
    $region4: #{tpu_custom_call.1} parent=1 // loop_header_branch
      %18 = sbr.rel (%p16) target = $region8
    $region5: #{tpu_custom_call.1} parent=1 // loop_body
      %s20 = ssub.s32 %s15, 1
      %s21 = ssub.s32 %s15, 2
      %s28 = sadd.s32 1, %s23
      %p29 = scmp.ge.s32.totalorder %s28, 2
      %s30 = scalar_select %p29, 0, %s28
      %s31 = sadd.s32 1, %s22
      %s32 = scalar_select %p29, %s31, %s22
      %p33 = scmp.ge.s32.totalorder %s32, 1
      %s34 = scalar_select %p33, 0, %s32
      %s35 = ssub.s32 %s23, %s30
      %s36 = ssub.s32 %s22, %s34
      %s37 = sor.u32 %s35, %s36
      %p38 = scmp.eq.s32.totalorder %s37, 0
      %s40 = sadd.s32 %s39, 1
      %s41 = scalar_select %p38, %s39, %s40
      %p44 = pneg %p38
      %p45 = scmp.eq.s32.totalorder %s15, 1
      %p46 = por %p44, %p45
      %p47 = scmp.ne.s32.totalorder %s39, %s42
      %p48 = scmp.eq.s32.totalorder %s15, 0
      %p49 = por %p47, %p48
      %p50 = scmp.ne.s32.totalorder %s39, %s42
      %p51 = scmp.eq.s32.totalorder %s20, 1
      %p52 = por %p50, %p51
      %p53 = scmp.ne.s32.totalorder %s42, %s43
      %p54 = scmp.eq.s32.totalorder %s20, 0
      %p55 = por %p53, %p54
      %p56 = scmp.ne.s32.totalorder %s42, %s43
      %p57 = scmp.eq.s32.totalorder %s21, 1
      %p58 = por %p56, %p57
      %p60 = scmp.ne.s32.totalorder %s43, %s59
      %p61 = scmp.eq.s32.totalorder %s21, 0
      %p62 = por %p60, %p61
      %s64 = sadd.s32 %s63, 1
      %p67 = scmp.eq.s32.totalorder %s15, 1
      %p68 = scmp.ne.s32.totalorder %s63, %s65
      %p69 = scmp.eq.s32.totalorder %s15, 0
      %p70 = por %p68, %p69
      %p71 = scmp.ne.s32.totalorder %s63, %s65
      %p72 = scmp.eq.s32.totalorder %s20, 1
      %p73 = por %p71, %p72
      %p74 = scmp.ne.s32.totalorder %s65, %s66
      %p75 = scmp.eq.s32.totalorder %s20, 0
      %p76 = por %p74, %p75
      %p77 = scmp.ne.s32.totalorder %s65, %s66
      %p78 = scmp.eq.s32.totalorder %s21, 1
      %p79 = por %p77, %p78
      %p81 = scmp.ne.s32.totalorder %s66, %s80
      %p82 = scmp.eq.s32.totalorder %s21, 0
      %p83 = por %p81, %p82
      %s85 = sadd.s32 %s84, 1
      %p88 = scmp.eq.s32.totalorder %s15, 1
      %p89 = scmp.ne.s32.totalorder %s84, %s86
      %p90 = scmp.eq.s32.totalorder %s15, 0
      %p91 = por %p89, %p90
      %p92 = scmp.ne.s32.totalorder %s84, %s86
      %p93 = scmp.eq.s32.totalorder %s20, 1
      %p94 = por %p92, %p93
      %p95 = scmp.ne.s32.totalorder %s86, %s87
      %p96 = scmp.eq.s32.totalorder %s20, 0
      %p97 = por %p95, %p96
      %p98 = scmp.ne.s32.totalorder %s86, %s87
      %p99 = scmp.eq.s32.totalorder %s21, 1
      %p100 = por %p98, %p99
      %p102 = scmp.ne.s32.totalorder %s87, %s101
      %p103 = scmp.eq.s32.totalorder %s21, 0
      %p104 = por %p102, %p103
      %s106 = sadd.s32 %s105, 1
      %p109 = scmp.eq.s32.totalorder %s15, 1
      %p110 = scmp.ne.s32.totalorder %s105, %s107
      %p111 = scmp.eq.s32.totalorder %s15, 0
      %p112 = por %p110, %p111
      %p113 = scmp.ne.s32.totalorder %s105, %s107
      %p114 = scmp.eq.s32.totalorder %s20, 1
      %p115 = por %p113, %p114
      %p116 = scmp.ne.s32.totalorder %s107, %s108
      %p117 = scmp.eq.s32.totalorder %s20, 0
      %p118 = por %p116, %p117
      %p119 = scmp.ne.s32.totalorder %s107, %s108
      %p120 = scmp.eq.s32.totalorder %s21, 1
      %p121 = por %p119, %p120
      %p123 = scmp.ne.s32.totalorder %s108, %s122
      %p124 = scmp.eq.s32.totalorder %s21, 0
      %p125 = por %p123, %p124
      %s127 = sadd.s32 %s126, 1
      %p130 = scmp.eq.s32.totalorder %s15, 1
      %p131 = scmp.ne.s32.totalorder %s126, %s128
      %p132 = scmp.eq.s32.totalorder %s15, 0
      %p133 = por %p131, %p132
      %p134 = scmp.ne.s32.totalorder %s126, %s128
      %p135 = scmp.eq.s32.totalorder %s20, 1
      %p136 = por %p134, %p135
      %p137 = scmp.ne.s32.totalorder %s128, %s129
      %p138 = scmp.eq.s32.totalorder %s20, 0
      %p139 = por %p137, %p138
      %p140 = scmp.ne.s32.totalorder %s128, %s129
      %p141 = scmp.eq.s32.totalorder %s21, 1
      %p142 = por %p140, %p141
      %p144 = scmp.ne.s32.totalorder %s129, %s143
      %p145 = scmp.eq.s32.totalorder %s21, 0
      %p146 = por %p144, %p145
      %s148 = sadd.s32 %s147, 1
      %p151 = scmp.eq.s32.totalorder %s15, 1
      %p152 = scmp.ne.s32.totalorder %s147, %s149
      %p153 = scmp.eq.s32.totalorder %s15, 0
      %p154 = por %p152, %p153
      %p155 = scmp.ne.s32.totalorder %s147, %s149
      %p156 = scmp.eq.s32.totalorder %s20, 1
      %p157 = por %p155, %p156
      %p158 = scmp.ne.s32.totalorder %s149, %s150
      %p159 = scmp.eq.s32.totalorder %s20, 0
      %p160 = por %p158, %p159
      %p161 = scmp.ne.s32.totalorder %s149, %s150
      %p162 = scmp.eq.s32.totalorder %s21, 1
      %p163 = por %p161, %p162
      %p165 = scmp.ne.s32.totalorder %s150, %s164
      %p166 = scmp.eq.s32.totalorder %s21, 0
      %p167 = por %p165, %p166
      %s168 = ssub.s32 %s22, %s34
      %p169 = scmp.eq.s32.totalorder %s168, 0
      %s171 = sadd.s32 %s170, 1
      %s172 = scalar_select %p169, %s170, %s171
      %p175 = pneg %p169
      %p176 = scmp.eq.s32.totalorder %s15, 1
      %p177 = por %p175, %p176
      %p178 = scmp.ne.s32.totalorder %s170, %s173
      %p179 = scmp.eq.s32.totalorder %s15, 0
      %p180 = por %p178, %p179
      %p181 = scmp.ne.s32.totalorder %s170, %s173
      %p182 = scmp.eq.s32.totalorder %s20, 1
      %p183 = por %p181, %p182
      %p184 = scmp.ne.s32.totalorder %s173, %s174
      %p185 = scmp.eq.s32.totalorder %s20, 0
      %p186 = por %p184, %p185
      %p187 = scmp.ne.s32.totalorder %s173, %s174
      %p188 = scmp.eq.s32.totalorder %s21, 1
      %p189 = por %p187, %p188
      %p191 = scmp.ne.s32.totalorder %s174, %s190
      %p192 = scmp.eq.s32.totalorder %s21, 0
      %p193 = por %p191, %p192
      %p194 = scmp.le.s32.totalorder 1, %s15
      %p195 = scmp.lt.s32.totalorder %s15, 3
      %p196 = pnand %p194, %p195
      %p197 = pneg %p196
      // Predicated region
      $region9: #{tpu_custom_call.1} parent=5 // pred_check
        _
      $region10: #{tpu_custom_call.1} parent=5 // pred_check_branch
        %199 = sbr.rel (%p196) target = $region12
      $region11: #{tpu_custom_call.1} parent=5 // pred_region
        %s200 = ssub.s32 %s15, 1
        // Predicated region
        $region13: #{tpu_custom_call.1} parent=11 // pred_check
          %p201 = pneg %p76
        $region14: #{tpu_custom_call.1} parent=11 // pred_check_branch
          %203 = sbr.rel (%p201) target = $region16
        $region15: #{tpu_custom_call.1} parent=11 // pred_region
          %205 = vsyncadd [#allocation4], 0
          %s206 = sshll.u32 %s1, 4
          %s207 = int_to_ptr.hbm [resolvable:$true] %s206
          %s208 = sshll.u32 [#allocation3], 4
          %s209 = int_to_ptr.vmem [resolvable:$true] %s208
          %214 = dma.hbm_to_vmem [thread:$0]  %s207, 2048, %s209, [#allocation4], 128, 128, 8
        $region16: #{tpu_custom_call.1} parent=11 // pred_fallthru
          _
        // Predicated region
        $region17: #{tpu_custom_call.1} parent=11 // pred_check
          %p215 = pneg %p97
        $region18: #{tpu_custom_call.1} parent=11 // pred_check_branch
          %217 = sbr.rel (%p215) target = $region20
        $region19: #{tpu_custom_call.1} parent=11 // pred_region
          %219 = vsyncadd [#allocation7], 0
          %s220 = sshll.u32 %s2, 4
          %s221 = int_to_ptr.hbm [resolvable:$true] %s220
          %s222 = sshll.u32 [#allocation6], 4
          %s223 = int_to_ptr.vmem [resolvable:$true] %s222
          %228 = dma.hbm_to_vmem [thread:$0]  %s221, 2048, %s223, [#allocation7], 128, 128, 8
        $region20: #{tpu_custom_call.1} parent=11 // pred_fallthru
          _
        // Predicated region
        $region21: #{tpu_custom_call.1} parent=11 // pred_check
          %p229 = pneg %p118
        $region22: #{tpu_custom_call.1} parent=11 // pred_check_branch
          %231 = sbr.rel (%p229) target = $region24
        $region23: #{tpu_custom_call.1} parent=11 // pred_region
          _
        $region24: #{tpu_custom_call.1} parent=11 // pred_fallthru
          _
        // Predicated region
        $region25: #{tpu_custom_call.1} parent=11 // pred_check
          %p232 = pneg %p139
        $region26: #{tpu_custom_call.1} parent=11 // pred_check_branch
          %234 = sbr.rel (%p232) target = $region28
        $region27: #{tpu_custom_call.1} parent=11 // pred_region
          %236 = vsyncadd [#allocation7], 0
          %s237 = sshll.u32 %s4, 4
          %s238 = int_to_ptr.hbm [resolvable:$true] %s237
          %s239 = sshll.u32 [#allocation8], 4
          %s240 = int_to_ptr.vmem [resolvable:$true] %s239
          %245 = dma.hbm_to_vmem [thread:$0]  %s238, 2048, %s240, [#allocation7], 128, 128, 8
        $region28: #{tpu_custom_call.1} parent=11 // pred_fallthru
          _
        // Predicated region
        $region29: #{tpu_custom_call.1} parent=11 // pred_check
          %p246 = pneg %p160
        $region30: #{tpu_custom_call.1} parent=11 // pred_check_branch
          %248 = sbr.rel (%p246) target = $region32
        $region31: #{tpu_custom_call.1} parent=11 // pred_region
          _
        $region32: #{tpu_custom_call.1} parent=11 // pred_fallthru
          _
      $region12: #{tpu_custom_call.1} parent=5 // pred_fallthru
        _
      %p249 = scmp.lt.s32.totalorder %s15, 2
      // Predicated region
      $region33: #{tpu_custom_call.1} parent=5 // pred_check
        %p250 = pneg %p249
      $region34: #{tpu_custom_call.1} parent=5 // pred_check_branch
        %252 = sbr.rel (%p250) target = $region36
      $region35: #{tpu_custom_call.1} parent=5 // pred_region
        // Predicated region
        $region37: #{tpu_custom_call.1} parent=35 // pred_check
          %p253 = pneg %p49
        $region38: #{tpu_custom_call.1} parent=35 // pred_check_branch
          %255 = sbr.rel (%p253) target = $region40
        $region39: #{tpu_custom_call.1} parent=35 // pred_region
          %p256 = scmp.lt.s32.totalorder %s23, 1
          %s257 = scalar_select %p256, %s23, 1
          %p258 = scmp.lt.s32.totalorder %s22, 0
          %s259 = scalar_select %p258, %s22, 0
          %s260 = sadd.s32 %s259, %s257
          %s261 = smul.addr %s260, 8
          %s262 = scalar_lea.vmem %s0, %s261
        $region40: #{tpu_custom_call.1} parent=35 // pred_fallthru
          _
      $region36: #{tpu_custom_call.1} parent=5 // pred_fallthru
        _
      %p263 = scmp.le.s32.totalorder 1, %s15
      %p264 = scmp.lt.s32.totalorder %s15, 3
      %p265 = pnand %p263, %p264
      %p266 = pneg %p265
      // Predicated region
      $region41: #{tpu_custom_call.1} parent=5 // pred_check
        _
      $region42: #{tpu_custom_call.1} parent=5 // pred_check_branch
        %268 = sbr.rel (%p265) target = $region44
      $region43: #{tpu_custom_call.1} parent=5 // pred_region
        %s269 = ssub.s32 %s15, 1
        // Predicated region
        $region45: #{tpu_custom_call.1} parent=43 // pred_check
          %p270 = pneg %p76
        $region46: #{tpu_custom_call.1} parent=43 // pred_check_branch
          %272 = sbr.rel (%p270) target = $region48
        $region47: #{tpu_custom_call.1} parent=43 // pred_region
          %274 = dma.done [#allocation4], 2048
        $region48: #{tpu_custom_call.1} parent=43 // pred_fallthru
          _
        // Predicated region
        $region49: #{tpu_custom_call.1} parent=43 // pred_check
          %p275 = pneg %p97
        $region50: #{tpu_custom_call.1} parent=43 // pred_check_branch
          %277 = sbr.rel (%p275) target = $region52
        $region51: #{tpu_custom_call.1} parent=43 // pred_region
          %279 = dma.done [#allocation7], 2048
        $region52: #{tpu_custom_call.1} parent=43 // pred_fallthru
          _
        // Predicated region
        $region53: #{tpu_custom_call.1} parent=43 // pred_check
          %p280 = pneg %p139
        $region54: #{tpu_custom_call.1} parent=43 // pred_check_branch
          %282 = sbr.rel (%p280) target = $region56
        $region55: #{tpu_custom_call.1} parent=43 // pred_region
          %284 = dma.done [#allocation7], 2048
        $region56: #{tpu_custom_call.1} parent=43 // pred_fallthru
          _
        %p285 = scmp.lt.s32.totalorder %s25, 1
        %s286 = scalar_select %p285, %s25, 1
        %p287 = scmp.lt.s32.totalorder %s24, 0
        %s288 = scalar_select %p287, %s24, 0
        %s289 = sadd.s32 %s288, %s286
        %s290 = smul.addr %s289, 8
        %s291 = scalar_lea.vmem %s0, %s290
        %p292 = pneg %p55
        %p293 = pneg %p52
        %p294 = pneg %p76
        %p295 = pneg %p73
        %p296 = pneg %p97
        %p297 = pneg %p94
        %p298 = pneg %p118
        %p299 = pneg %p115
        %p300 = pneg %p139
        %p301 = pneg %p136
        %p302 = pneg %p160
        %p303 = pneg %p157
        %p304 = pneg %p186
        %p305 = pneg %p183
        %p306 = scmp.lt.s32.totalorder %s25, 1
        %s307 = scalar_select %p306, %s25, 1
        %p308 = scmp.lt.s32.totalorder %s24, 0
        %s309 = scalar_select %p308, %s24, 0
        %s310 = sadd.s32 %s309, %s307
        %s311 = smul.addr %s310, 8
        %s312 = scalar_lea.vmem %s0, %s311
        %p313 = scmp.eq.s32.totalorder %s25, 0
        // Predicated region
        $region57: #{tpu_custom_call.1} parent=43 // pred_check
          %p314 = pneg %p313
        $region58: #{tpu_custom_call.1} parent=43 // pred_check_branch
          %316 = sbr.rel (%p314) target = $region60
        $region59: #{tpu_custom_call.1} parent=43 // pred_region
          %317 = vst [vmem:[#allocation2] sm:$0xff] 0.0
        $region60: #{tpu_custom_call.1} parent=43 // pred_fallthru
          _
        %v318 = vld [vmem:[%s312] sm:$0xff]
        %v319 = vlaneseq
        %v320 = vand.u32 %v319, 127
        %v321 = vperm.slane %v318, 0
        %v322 = vlaneseq
        %v323 = vshrl.u32 %v322, 7
        %325 = vset.pattern.permute.xlu0 %v323
        %326 = vperm.xlu0 %325, %v321
        %v327 = vpop.permute.xlu0 %326
        %v328 = vperm.slane %v318, 1
        %v329 = vlaneseq
        %v330 = vshrl.u32 %v329, 7
        %332 = vset.pattern.permute.xlu0 %v330
        %333 = vperm.xlu0 %332, %v328
        %v334 = vpop.permute.xlu0 %333
        %v335 = vperm.slane %v318, 2
        %v336 = vlaneseq
        %v337 = vshrl.u32 %v336, 7
        %339 = vset.pattern.permute.xlu0 %v337
        %340 = vperm.xlu0 %339, %v335
        %v341 = vpop.permute.xlu0 %340
        %v342 = vperm.slane %v318, 3
        %v343 = vlaneseq
        %v344 = vshrl.u32 %v343, 7
        %346 = vset.pattern.permute.xlu0 %v344
        %347 = vperm.xlu0 %346, %v342
        %v348 = vpop.permute.xlu0 %347
        %v349 = vperm.slane %v318, 4
        %v350 = vlaneseq
        %v351 = vshrl.u32 %v350, 7
        %353 = vset.pattern.permute.xlu0 %v351
        %354 = vperm.xlu0 %353, %v349
        %v355 = vpop.permute.xlu0 %354
        %v356 = vperm.slane %v318, 5
        %v357 = vlaneseq
        %v358 = vshrl.u32 %v357, 7
        %360 = vset.pattern.permute.xlu0 %v358
        %361 = vperm.xlu0 %360, %v356
        %v362 = vpop.permute.xlu0 %361
        %v363 = vperm.slane %v318, 6
        %v364 = vlaneseq
        %v365 = vshrl.u32 %v364, 7
        %367 = vset.pattern.permute.xlu0 %v365
        %368 = vperm.xlu0 %367, %v363
        %v369 = vpop.permute.xlu0 %368
        %v370 = vperm.slane %v318, 7
        %v371 = vlaneseq
        %v372 = vshrl.u32 %v371, 7
        %374 = vset.pattern.permute.xlu0 %v372
        %375 = vperm.xlu0 %374, %v370
        %v376 = vpop.permute.xlu0 %375
        %vm377 = vcmp.eq.s32.totalorder %v327, %v320
        %vm378 = vcmp.eq.s32.totalorder %v334, %v320
        %vm379 = vcmp.eq.s32.totalorder %v341, %v320
        %vm380 = vcmp.eq.s32.totalorder %v348, %v320
        %vm381 = vcmp.eq.s32.totalorder %v355, %v320
        %vm382 = vcmp.eq.s32.totalorder %v362, %v320
        %vm383 = vcmp.eq.s32.totalorder %v369, %v320
        %vm384 = vcmp.eq.s32.totalorder %v376, %v320
        %v385 = vsel %vm377, 1, 0
        %v386 = vsel %vm378, 1, 0
        %v387 = vsel %vm379, 1, 0
        %v388 = vsel %vm380, 1, 0
        %v389 = vsel %vm381, 1, 0
        %v390 = vsel %vm382, 1, 0
        %v391 = vsel %vm383, 1, 0
        %v392 = vsel %vm384, 1, 0
        %v393 = vcvt.s32.f32 %v385
        %v394 = vcvt.s32.f32 %v386
        %v395 = vcvt.s32.f32 %v387
        %v396 = vcvt.s32.f32 %v388
        %v397 = vcvt.s32.f32 %v389
        %v398 = vcvt.s32.f32 %v390
        %v399 = vcvt.s32.f32 %v391
        %v400 = vcvt.s32.f32 %v392
        %v401 = vadd.f32 %v393, %v394
        %v402 = vadd.f32 %v401, %v395
        %v403 = vadd.f32 %v402, %v396
        %v404 = vadd.f32 %v403, %v397
        %v405 = vadd.f32 %v404, %v398
        %v406 = vadd.f32 %v405, %v399
        %v407 = vadd.f32 %v406, %v400
        %v408 = vld [vmem:[#allocation2] sm:$0xff]
        %v409 = vld [vmem:[#allocation3] sm:$0xff]
        %v410 = vld [vmem:[#allocation3 + $0x8] sm:$0xff]
        %v411 = vld [vmem:[#allocation3 + $0x10] sm:$0xff]
        %v412 = vld [vmem:[#allocation3 + $0x18] sm:$0xff]
        %v413 = vld [vmem:[#allocation3 + $0x20] sm:$0xff]
        %v414 = vld [vmem:[#allocation3 + $0x28] sm:$0xff]
        %v415 = vld [vmem:[#allocation3 + $0x30] sm:$0xff]
        %v416 = vld [vmem:[#allocation3 + $0x38] sm:$0xff]
        %v417 = vld [vmem:[#allocation3 + $0x40] sm:$0xff]
        %v418 = vld [vmem:[#allocation3 + $0x48] sm:$0xff]
        %v419 = vld [vmem:[#allocation3 + $0x50] sm:$0xff]
        %v420 = vld [vmem:[#allocation3 + $0x58] sm:$0xff]
        %v421 = vld [vmem:[#allocation3 + $0x60] sm:$0xff]
        %v422 = vld [vmem:[#allocation3 + $0x68] sm:$0xff]
        %v423 = vld [vmem:[#allocation3 + $0x70] sm:$0xff]
        %v424 = vld [vmem:[#allocation3 + $0x78] sm:$0xff]
        %425 = vmatpush.msra.mxu0 %v424
        %426 = vmatpush.msra.mxu0 %v423
        %427 = vmatpush.msra.mxu0 %v422
        %428 = vmatpush.msra.mxu0 %v421
        %429 = vmatpush.msra.mxu0 %v420
        %430 = vmatpush.msra.mxu0 %v419
        %431 = vmatpush.msra.mxu0 %v418
        %432 = vmatpush.msra.mxu0 %v417
        %433 = vmatpush.msra.mxu0 %v416
        %434 = vmatpush.msra.mxu0 %v415
        %435 = vmatpush.msra.mxu0 %v414
        %436 = vmatpush.msra.mxu0 %v413
        %437 = vmatpush.msra.mxu0 %v412
        %438 = vmatpush.msra.mxu0 %v411
        %439 = vmatpush.msra.mxu0 %v410
        %440 = vmatpush.msra.mxu0 %v409
        %441 = vmatmul.f32.gmra.mxu0 %v407
        %v442 = vpop.f32.mrf.mxu0
        %v443 = vadd.f32 0.0, %v442
        %444 = vdwg.mxu0
        %v445 = vadd.f32 %v408, %v443
        %446 = vst [vmem:[#allocation2] sm:$0xff] %v445
        %p447 = scmp.eq.s32.totalorder %s25, 1
        // Predicated region
        $region61: #{tpu_custom_call.1} parent=43 // pred_check
          %p448 = pneg %p447
        $region62: #{tpu_custom_call.1} parent=43 // pred_check_branch
          %450 = sbr.rel (%p448) target = $region64
        $region63: #{tpu_custom_call.1} parent=43 // pred_region
          %v451 = vld [vmem:[#allocation2] sm:$0xff]
          %v452 = vmul.f32 %v451, 0.0625
          %v453 = vld [vmem:[#allocation6] sm:$0xff]
          %v454 = vld [vmem:[#allocation6 + $0x8] sm:$0xff]
          %v455 = vld [vmem:[#allocation6 + $0x10] sm:$0xff]
          %v456 = vld [vmem:[#allocation6 + $0x18] sm:$0xff]
          %v457 = vld [vmem:[#allocation6 + $0x20] sm:$0xff]
          %v458 = vld [vmem:[#allocation6 + $0x28] sm:$0xff]
          %v459 = vld [vmem:[#allocation6 + $0x30] sm:$0xff]
          %v460 = vld [vmem:[#allocation6 + $0x38] sm:$0xff]
          %v461 = vld [vmem:[#allocation6 + $0x40] sm:$0xff]
          %v462 = vld [vmem:[#allocation6 + $0x48] sm:$0xff]
          %v463 = vld [vmem:[#allocation6 + $0x50] sm:$0xff]
          %v464 = vld [vmem:[#allocation6 + $0x58] sm:$0xff]
          %v465 = vld [vmem:[#allocation6 + $0x60] sm:$0xff]
          %v466 = vld [vmem:[#allocation6 + $0x68] sm:$0xff]
          %v467 = vld [vmem:[#allocation6 + $0x70] sm:$0xff]
          %v468 = vld [vmem:[#allocation6 + $0x78] sm:$0xff]
          %v469 = vld [vmem:[%s3] sm:$0x1]
          %v471 = vperm.slane %v469, 0
          %473 = vmatpush.msra.mxu0 %v468
          %474 = vmatpush.msra.mxu0 %v467
          %475 = vmatpush.msra.mxu0 %v466
          %476 = vmatpush.msra.mxu0 %v465
          %477 = vmatpush.msra.mxu0 %v464
          %478 = vmatpush.msra.mxu0 %v463
          %479 = vmatpush.msra.mxu0 %v462
          %480 = vmatpush.msra.mxu0 %v461
          %481 = vmatpush.msra.mxu0 %v460
          %482 = vmatpush.msra.mxu0 %v459
          %483 = vmatpush.msra.mxu0 %v458
          %484 = vmatpush.msra.mxu0 %v457
          %485 = vmatpush.msra.mxu0 %v456
          %486 = vmatpush.msra.mxu0 %v455
          %487 = vmatpush.msra.mxu0 %v454
          %488 = vmatpush.msra.mxu0 %v453
          %489 = vmatmul.f32.gmra.mxu0 %v452
          %v490 = vpop.f32.mrf.mxu0
          %v491 = vadd.f32 %v471, %v490
          %492 = vdwg.mxu0
          %v493 = vmax.f32 %v491, 0.0
          %v494 = vld [vmem:[#allocation8] sm:$0xff]
          %v495 = vld [vmem:[#allocation8 + $0x8] sm:$0xff]
          %v496 = vld [vmem:[#allocation8 + $0x10] sm:$0xff]
          %v497 = vld [vmem:[#allocation8 + $0x18] sm:$0xff]
          %v498 = vld [vmem:[#allocation8 + $0x20] sm:$0xff]
          %v499 = vld [vmem:[#allocation8 + $0x28] sm:$0xff]
          %v500 = vld [vmem:[#allocation8 + $0x30] sm:$0xff]
          %v501 = vld [vmem:[#allocation8 + $0x38] sm:$0xff]
          %v502 = vld [vmem:[#allocation8 + $0x40] sm:$0xff]
          %v503 = vld [vmem:[#allocation8 + $0x48] sm:$0xff]
          %v504 = vld [vmem:[#allocation8 + $0x50] sm:$0xff]
          %v505 = vld [vmem:[#allocation8 + $0x58] sm:$0xff]
          %v506 = vld [vmem:[#allocation8 + $0x60] sm:$0xff]
          %v507 = vld [vmem:[#allocation8 + $0x68] sm:$0xff]
          %v508 = vld [vmem:[#allocation8 + $0x70] sm:$0xff]
          %v509 = vld [vmem:[#allocation8 + $0x78] sm:$0xff]
          %v510 = vld [vmem:[%s5] sm:$0x1]
          %v512 = vperm.slane %v510, 0
          %514 = vmatpush.msra.mxu0 %v509
          %515 = vmatpush.msra.mxu0 %v508
          %516 = vmatpush.msra.mxu0 %v507
          %517 = vmatpush.msra.mxu0 %v506
          %518 = vmatpush.msra.mxu0 %v505
          %519 = vmatpush.msra.mxu0 %v504
          %520 = vmatpush.msra.mxu0 %v503
          %521 = vmatpush.msra.mxu0 %v502
          %522 = vmatpush.msra.mxu0 %v501
          %523 = vmatpush.msra.mxu0 %v500
          %524 = vmatpush.msra.mxu0 %v499
          %525 = vmatpush.msra.mxu0 %v498
          %526 = vmatpush.msra.mxu0 %v497
          %527 = vmatpush.msra.mxu0 %v496
          %528 = vmatpush.msra.mxu0 %v495
          %529 = vmatpush.msra.mxu0 %v494
          %530 = vmatmul.f32.gmra.mxu0 %v493
          %v531 = vpop.f32.mrf.mxu0
          %v532 = vadd.f32 %v512, %v531
          %533 = vdwg.mxu0
          %534 = vst [vmem:[#allocation9] sm:$0xff] %v532
        $region64: #{tpu_custom_call.1} parent=43 // pred_fallthru
          _
        // Predicated region
        $region65: #{tpu_custom_call.1} parent=43 // pred_check
          %p535 = pneg %p183
        $region66: #{tpu_custom_call.1} parent=43 // pred_check_branch
          %537 = sbr.rel (%p535) target = $region68
        $region67: #{tpu_custom_call.1} parent=43 // pred_region
          %539 = vsyncadd [#allocation5], 0
          %s540 = smul.addr %s24, 8
          %s541 = scalar_lea.hbm %s6, %s540
          %s543 = sshll.u32 [#allocation9], 4
          %s544 = int_to_ptr.vmem [resolvable:$true] %s543
          %s545 = sshll.u32 %s541, 4
          %s546 = int_to_ptr.hbm [resolvable:$true] %s545
          %548 = dma.vmem_to_hbm [thread:$0]  %s544, 128, %s546, [#allocation5]
        $region68: #{tpu_custom_call.1} parent=43 // pred_fallthru
          _
        // Predicated region
        $region69: #{tpu_custom_call.1} parent=43 // pred_check
          %p549 = pneg %p183
        $region70: #{tpu_custom_call.1} parent=43 // pred_check_branch
          %551 = sbr.rel (%p549) target = $region72
        $region71: #{tpu_custom_call.1} parent=43 // pred_region
          %553 = dma.done [#allocation5], 128
        $region72: #{tpu_custom_call.1} parent=43 // pred_fallthru
          _
      $region44: #{tpu_custom_call.1} parent=5 // pred_fallthru
        _
      %p554 = scmp.le.s32.totalorder 2, %s15
      // Predicated region
      $region73: #{tpu_custom_call.1} parent=5 // pred_check
        %p555 = pneg %p554
      $region74: #{tpu_custom_call.1} parent=5 // pred_check_branch
        %557 = sbr.rel (%p555) target = $region76
      $region75: #{tpu_custom_call.1} parent=5 // pred_region
        %s558 = ssub.s32 %s15, 2
      $region76: #{tpu_custom_call.1} parent=5 // pred_fallthru
        _
    $region6: #{tpu_custom_call.1} parent=1 // loop_footer
      %s19 = sadd.s32 1, %s15
    $region7: #{tpu_custom_call.1} parent=1 // loop_footer_branch
      %14 = sbr.rel target = $region3
    $region8: #{tpu_custom_call.1} parent=1 // loop_exit
      _
    %559 = vsyncpa [#allocation4], 1
    %s560 = scalar_lea.sflag [#allocation4], 1
    %561 = vsyncpa %s560, 1
    %562 = vsyncpa [#allocation7], 1
    %563 = vsyncpa [#allocation5], 1
    %s564 = scalar_lea.sflag [#allocation5], 1
    %565 = vsyncpa %s564, 1

</llo_original>
